<compile_context>
chip_gen: v6e
topology: v6e:2x2x1
jax: 0.10.0
libtpu: 0.0.40
codegen_flags: <defaults>
</compile_context>

<pallas_src>
import jax
import jax.numpy as jnp
from jax.experimental import pallas as pl
from jax.experimental.pallas import tpu as pltpu


def _head_kernel(cls_ref, mf_ref, wmd_ref, params_ref, o_ref):
    # cls_ref    : [TB, H]   CLS-token slab (sliced in the wrapper)
    # mf_ref     : [TB, F]   manual features
    # wmd_ref    : [F, H]    manual_dense.weight, pre-transposed (resident)
    # params_ref : [4, H]    row 0: manual_dense.bias
    #                        row 1: out_proj_new.weight[:, :H]   (CLS half)
    #                        row 2: out_proj_new.weight[:, H:]   (tanh half)
    #                        row 3: [out_proj_new.bias, 0, ...]
    # o_ref      : [TB, 1]
    x = cls_ref[...]                                             # [TB, H] native
    mf = mf_ref[...]                                             # [TB, F] native

    # manual_dense: MXU in native dtype, f32 accumulation; bias added in f32.
    y = jnp.dot(mf, wmd_ref[...], preferred_element_type=jnp.float32)
    y = y + params_ref[0:1, :].astype(jnp.float32)               # [TB, H] f32
    # tanh + the elementwise projection run in the input dtype (bf16 VALU/EUP
    # on v6e/v7x when inputs are bf16; plain f32 otherwise).
    y = jnp.tanh(y).astype(x.dtype)                              # [TB, H]

    wx = params_ref[1:2, :]                                      # [1, H]
    wy = params_ref[2:3, :]                                      # [1, H]
    contrib = x * wx + y * wy                                    # [TB, H] VPU

    # Final lane reduction + output bias accumulate in f32.
    out = jnp.sum(contrib.astype(jnp.float32), axis=-1, keepdims=True)
    out = out + params_ref[3:4, 0:1].astype(jnp.float32)         # [TB, 1]
    o_ref[...] = out.astype(o_ref.dtype)


def roberta_classification_head(features, manual_features,
                                w_manual, b_manual, w_out, b_out):
    B, S, H = features.shape
    F = manual_features.shape[-1]
    compute_dtype = features.dtype
    itemsize = jnp.dtype(compute_dtype).itemsize

    # ---- wrapper-side layout plumbing (outside the hot kernel) -------------
    # Contiguous CLS slab -> one clean dense DMA (no size-1 block on seq dim).
    cls = features[:, 0, :]                                      # [B, H]
    mf = manual_features.astype(compute_dtype)                   # [B, F]
    # manual_dense weight pre-transposed + pre-cast: no in-kernel .T / casts.
    w_manual_t = jnp.transpose(w_manual).astype(compute_dtype)   # [F, H]
    # Pack the small per-call parameters into one slab (fewer operands).
    params = jnp.concatenate([
        b_manual.reshape(1, H),
        w_out[:, :H].reshape(1, H),
        w_out[:, H:].reshape(1, H),
        jnp.pad(b_out.reshape(1, 1), ((0, 0), (0, H - 1))),
    ], axis=0).astype(compute_dtype)                             # [4, H]

    # ---- batch tiling -------------------------------------------------------
    # Single step for small B; otherwise multiple-of-8 tiles.  TB=256 keeps
    # double-buffered activations (2 * TB * (H+F) * itemsize) well under the
    # v7x 32 MiB scoped-VMEM default even at H=1024, while a "parallel" batch
    # axis lets both v7x TensorCores split B (no-op on 1-TC v5e/v6e).
    TB = B if B <= 512 else 256
    num_blocks = pl.cdiv(B, TB)

    cost = pl.CostEstimate(
        flops=int(2 * B * F * H + 4 * B * H),
        transcendentals=int(B * H),
        bytes_accessed=int((B * H + B * F + F * H + 4 * H) * itemsize + B * 4),
    )

    return pl.pallas_call(
        _head_kernel,
        out_shape=jax.ShapeDtypeStruct((B, 1), jnp.float32),
        grid=(num_blocks,),
        in_specs=[
            pl.BlockSpec((TB, H), lambda i: (i, 0)),     # CLS rows
            pl.BlockSpec((TB, F), lambda i: (i, 0)),     # manual features
            pl.BlockSpec((F, H), lambda i: (0, 0)),      # resident weight
            pl.BlockSpec((4, H), lambda i: (0, 0)),      # resident param slab
        ],
        out_specs=pl.BlockSpec((TB, 1), lambda i: (i, 0)),
        compiler_params=pltpu.CompilerParams(
            dimension_semantics=("parallel",)),
        cost_estimate=cost,
    )(cls, mf, w_manual_t, params)


def _reference(features, manual_features, w_manual, b_manual, w_out, b_out):
    x = features[:, 0, :].astype(jnp.float32)
    y = jnp.tanh(manual_features.astype(jnp.float32) @ w_manual.T + b_manual)
    cat = jnp.concatenate([x, y], axis=-1)
    return cat @ w_out.T + b_out


if __name__ == "__main__":
    # Small config consistent with the module: hidden_size=32, feature_size=16.
    B, S, H, F = 2, 8, 32, 16

    key = jax.random.PRNGKey(0)
    k_feat, k_mf, k_wm, k_bm, k_wo, k_bo = jax.random.split(key, 6)

    features = jax.random.normal(k_feat, (B, S, H), dtype=jnp.float32)
    manual_features = jax.random.normal(k_mf, (B, F), dtype=jnp.float32)

    # nn.Linear shapes: weight [out, in], bias [out].
    w_manual = jax.random.normal(k_wm, (H, F), dtype=jnp.float32) * 0.05
    b_manual = jax.random.normal(k_bm, (H,), dtype=jnp.float32) * 0.05
    w_out = jax.random.normal(k_wo, (1, 2 * H), dtype=jnp.float32) * 0.05
    b_out = jax.random.normal(k_bo, (1,), dtype=jnp.float32) * 0.05

    out = roberta_classification_head(features, manual_features,
                                      w_manual, b_manual, w_out, b_out)
    out = jax.block_until_ready(out)

    ref = _reference(features, manual_features, w_manual, b_manual, w_out, b_out)
    assert out.shape == (B, 1), out.shape
    assert jnp.allclose(out, ref, atol=1e-4, rtol=1e-4), (out, ref)

    # TODO(synk): Dropout implemented as identity (inference mode); training-mode
    # stochastic dropout would need pltpu.prng_seed/prng_random_bits.
    print("KERNEL_OK")
</pallas_src>

<mosaic_0001>
module attributes {stable_mosaic.version = 11 : i64} {
  func.func @_head_kernel(%arg0: i32, %arg1: memref<2x32xf32, #tpu.memory_space<vmem>>, %arg2: memref<2x16xf32, #tpu.memory_space<vmem>>, %arg3: memref<16x32xf32, #tpu.memory_space<vmem>>, %arg4: memref<4x32xf32, #tpu.memory_space<vmem>>, %arg5: memref<2x1xf32, #tpu.memory_space<vmem>>) attributes {dimension_semantics = [#tpu.dimension_semantics<parallel>], iteration_bounds = array<i64: 1>, scalar_prefetch = 0 : i64, scratch_operands = 0 : i64, tpu.core_type = #tpu.core_type<tc>, window_params = [{transform_indices = @transform_0, window_bounds = array<i64: 2, 32>}, {transform_indices = @transform_1, window_bounds = array<i64: 2, 16>}, {pipeline_mode = #tpu.pipeline_mode<synchronous>, transform_indices = @transform_2, window_bounds = array<i64: 16, 32>}, {pipeline_mode = #tpu.pipeline_mode<synchronous>, transform_indices = @transform_3, window_bounds = array<i64: 4, 32>}, {transform_indices = @transform_4, window_bounds = array<i64: 2, 1>}]} {
    %c0 = arith.constant 0 : index
    %c0_0 = arith.constant 0 : index
    %0 = vector.load %arg1[%c0, %c0_0] : memref<2x32xf32, #tpu.memory_space<vmem>>, vector<2x32xf32>
    %c0_1 = arith.constant 0 : index
    %c0_2 = arith.constant 0 : index
    %1 = vector.load %arg2[%c0_1, %c0_2] : memref<2x16xf32, #tpu.memory_space<vmem>>, vector<2x16xf32>
    %c0_3 = arith.constant 0 : index
    %c0_4 = arith.constant 0 : index
    %2 = vector.load %arg3[%c0_3, %c0_4] : memref<16x32xf32, #tpu.memory_space<vmem>>, vector<16x32xf32>
    %cst = arith.constant dense<0.000000e+00> : vector<2x32xf32>
    %3 = tpu.matmul %1, %2, %cst {dimension_numbers = #tpu.dot_dimension_numbers<[1], [0], [0], [1], [0, 0, 1, 1], [], []>} : vector<2x16xf32>, vector<16x32xf32>, vector<2x32xf32> -> vector<2x32xf32>
    %c0_5 = arith.constant 0 : index
    %c0_6 = arith.constant 0 : index
    %4 = vector.load %arg4[%c0_5, %c0_6] : memref<4x32xf32, #tpu.memory_space<vmem>>, vector<1x32xf32>
    %5 = vector.broadcast %4 : vector<1x32xf32> to vector<2x32xf32>
    %6 = arith.addf %3, %5 : vector<2x32xf32>
    %7 = math.tanh %6 : vector<2x32xf32>
    %c1 = arith.constant 1 : index
    %c0_7 = arith.constant 0 : index
    %8 = vector.load %arg4[%c1, %c0_7] : memref<4x32xf32, #tpu.memory_space<vmem>>, vector<1x32xf32>
    %c2 = arith.constant 2 : index
    %c0_8 = arith.constant 0 : index
    %9 = vector.load %arg4[%c2, %c0_8] : memref<4x32xf32, #tpu.memory_space<vmem>>, vector<1x32xf32>
    %10 = vector.broadcast %8 : vector<1x32xf32> to vector<2x32xf32>
    %11 = arith.mulf %0, %10 : vector<2x32xf32>
    %12 = vector.broadcast %9 : vector<1x32xf32> to vector<2x32xf32>
    %13 = arith.mulf %7, %12 : vector<2x32xf32>
    %14 = arith.addf %11, %13 : vector<2x32xf32>
    %cst_9 = arith.constant dense<0.000000e+00> : vector<2xf32>
    %15 = vector.multi_reduction <add>, %14, %cst_9 [1] : vector<2x32xf32> to vector<2xf32>
    %16 = vector.shape_cast %15 : vector<2xf32> to vector<2x1xf32>
    %c3 = arith.constant 3 : index
    %c0_10 = arith.constant 0 : index
    %17 = vector.load %arg4[%c3, %c0_10] : memref<4x32xf32, #tpu.memory_space<vmem>>, vector<1x1xf32>
    %18 = vector.broadcast %17 : vector<1x1xf32> to vector<2x1xf32>
    %19 = arith.addf %16, %18 : vector<2x1xf32>
    %c0_11 = arith.constant 0 : index
    %c0_12 = arith.constant 0 : index
    %20 = vector.load %arg5[%c0_11, %c0_12] : memref<2x1xf32, #tpu.memory_space<vmem>>, vector<2x1xf32>
    tpu.vector_store %arg5[%c0_11, %c0_12], %19 {strides = array<i32>} : memref<2x1xf32, #tpu.memory_space<vmem>>, vector<2x1xf32>,
    return
  }
  func.func @transform_0(%arg0: i32) -> (i32, i32) {
    %c0_i32 = arith.constant 0 : i32
    %c0_i32_0 = arith.constant 0 : i32
    return %arg0, %c0_i32 : i32, i32
  }
  func.func @transform_1(%arg0: i32) -> (i32, i32) {
    %c0_i32 = arith.constant 0 : i32
    %c0_i32_0 = arith.constant 0 : i32
    return %arg0, %c0_i32 : i32, i32
  }
  func.func @transform_2(%arg0: i32) -> (i32, i32) {
    %c0_i32 = arith.constant 0 : i32
    %c0_i32_0 = arith.constant 0 : i32
    %c0_i32_1 = arith.constant 0 : i32
    return %c0_i32, %c0_i32_0 : i32, i32
  }
  func.func @transform_3(%arg0: i32) -> (i32, i32) {
    %c0_i32 = arith.constant 0 : i32
    %c0_i32_0 = arith.constant 0 : i32
    %c0_i32_1 = arith.constant 0 : i32
    return %c0_i32, %c0_i32_0 : i32, i32
  }
  func.func @transform_4(%arg0: i32) -> (i32, i32) {
    %c0_i32 = arith.constant 0 : i32
    %c0_i32_0 = arith.constant 0 : i32
    return %arg0, %c0_i32 : i32, i32
  }
}

</mosaic_0001>

<llo_original>
// kernel: tpu_custom_call.1
$region0: #{tpu_custom_call.1}
  #allocation0 [shape = 'u32[]', space=smem, size = 0x4, offset = 0x4, fixed_abs, tag = 'smem constant byte address 0x4 - core index']
  #allocation1 [shape = 'u32[144,128]{1,0:T(1,128)}', space=vmem, size = 0x12000, scoped, tag = 'internal scratch']
  %s0 = inlined_call_operand.hbm [shape: f32[2,32], index: 0, kind: input, shape index: {}]
  %s1 = inlined_call_operand.hbm [shape: f32[2,16], index: 1, kind: input, shape index: {}]
  %s2 = inlined_call_operand.hbm [shape: f32[16,32], index: 2, kind: input, shape index: {}]
  %s3 = inlined_call_operand.vmem [shape: f32[4,32], index: 3, kind: input, shape index: {}]
  %s4 = inlined_call_operand.vmem [shape: f32[2,1], index: 4, kind: output, shape index: {}]
  %s5 = sld [smem:[#allocation0]]
  $region38: #{tpu_custom_call.1} parent=0
    _
  %s7 = ssub.s32 1, %s5
  %s8 = scalar_select 0, %s7, %s5
  $region1: #{tpu_custom_call.1} parent=0
    #allocation2 [shape = 'u8[1024]{0}', space=vmem, size = 0x400, scoped, tag = 'input window, operand 0, single buffered']
    #allocation3 [shape = 's32[1]{0}', space=sflag, size = 0x4, scoped, tag = 'scoped memory for tpu_custom_call.1']
    #allocation4 [shape = 'u8[1024]{0}', space=vmem, size = 0x400, scoped, tag = 'input window, operand 1, single buffered']
    #allocation5 [shape = 's32[1]{0}', space=sflag, size = 0x4, scoped, tag = 'scoped memory for tpu_custom_call.1']
    #allocation6 [shape = 'u8[8192]{0}', space=vmem, size = 0x2000, scoped, tag = 'input window, operand 2, single buffered']
    %9 = vsyncpa [#allocation3], 0
    %10 = vsyncpa [#allocation5], 0
    // Predicated region
    $region2: #{tpu_custom_call.1} parent=1 // pred_check
      _
    $region3: #{tpu_custom_call.1} parent=1 // pred_check_branch
      %12 = sbr.rel (0) target = $region5
    $region4: #{tpu_custom_call.1} parent=1 // pred_region
      %s14 = ssub.s32 32, 32
      %15 = vsyncadd [#allocation3], %s14
      %s17 = sshll.u32 [#allocation2], 4
      %s18 = int_to_ptr.vmem [resolvable:$true] %s17
      %20 = dma.hbm_to_vmem [thread:$0]  %s0, 32, %s18, [#allocation3]
    $region5: #{tpu_custom_call.1} parent=1 // pred_fallthru
      _
    // Predicated region
    $region6: #{tpu_custom_call.1} parent=1 // pred_check
      _
    $region7: #{tpu_custom_call.1} parent=1 // pred_check_branch
      %22 = sbr.rel (0) target = $region9
    $region8: #{tpu_custom_call.1} parent=1 // pred_region
      %s24 = ssub.s32 32, 32
      %25 = vsyncadd [#allocation5], %s24
      %s27 = sshll.u32 [#allocation4], 4
      %s28 = int_to_ptr.vmem [resolvable:$true] %s27
      %30 = dma.hbm_to_vmem [thread:$0]  %s1, 32, %s28, [#allocation5]
    $region9: #{tpu_custom_call.1} parent=1 // pred_fallthru
      _
    // Predicated region
    $region10: #{tpu_custom_call.1} parent=1 // pred_check
      _
    $region11: #{tpu_custom_call.1} parent=1 // pred_check_branch
      %32 = sbr.rel (0) target = $region13
    $region12: #{tpu_custom_call.1} parent=1 // pred_region
      %s34 = ssub.s32 256, 256
      %35 = vsyncadd [#allocation5], %s34
      %s36 = sshll.u32 [#allocation6], 4
      %s37 = int_to_ptr.vmem [resolvable:$true] %s36
      %42 = dma.hbm_to_vmem [thread:$0]  %s2, 256, %s37, [#allocation5], 128, 128, 8
    $region13: #{tpu_custom_call.1} parent=1 // pred_fallthru
      _
    // Predicated region
    $region14: #{tpu_custom_call.1} parent=1 // pred_check
      _
    $region15: #{tpu_custom_call.1} parent=1 // pred_check_branch
      %44 = sbr.rel (0) target = $region17
    $region16: #{tpu_custom_call.1} parent=1 // pred_region
      _
    $region17: #{tpu_custom_call.1} parent=1 // pred_fallthru
      _
    // Predicated region
    $region18: #{tpu_custom_call.1} parent=1 // pred_check
      _
    $region19: #{tpu_custom_call.1} parent=1 // pred_check_branch
      %46 = sbr.rel (0) target = $region21
    $region20: #{tpu_custom_call.1} parent=1 // pred_region
      %47 = dma.done [#allocation3], 32
    $region21: #{tpu_custom_call.1} parent=1 // pred_fallthru
      _
    // Predicated region
    $region22: #{tpu_custom_call.1} parent=1 // pred_check
      _
    $region23: #{tpu_custom_call.1} parent=1 // pred_check_branch
      %49 = sbr.rel (0) target = $region25
    $region24: #{tpu_custom_call.1} parent=1 // pred_region
      %50 = dma.done [#allocation5], 32
    $region25: #{tpu_custom_call.1} parent=1 // pred_fallthru
      _
    // Predicated region
    $region26: #{tpu_custom_call.1} parent=1 // pred_check
      _
    $region27: #{tpu_custom_call.1} parent=1 // pred_check_branch
      %52 = sbr.rel (0) target = $region29
    $region28: #{tpu_custom_call.1} parent=1 // pred_region
      %53 = dma.done [#allocation5], 256
    $region29: #{tpu_custom_call.1} parent=1 // pred_fallthru
      _
    %v54 = vld [vmem:[#allocation2] sm:$0x3]
    %v55 = vld [vmem:[#allocation4] sm:$0x3]
    %v56 = vld [vmem:[#allocation6] sm:$0xff]
    %v57 = vld [vmem:[#allocation6 + $0x8] sm:$0xff]
    %v58 = vld [vmem:[%s3] sm:$0x1]
    %v59 = vlaneseq
    %v60 = vshrl.u32 %v59, 7
    %v61 = vsub.s32 0, %v60
    %v62 = vrot.slane %v58, %v61
    %vm63 = vcmask 130048
    %v65 = vsel %vm63, %v55, 0
    %67 = vmatprep.subr.mxu0 0.0
    %68 = vmatpush1.msra.mxu0 0.0
    %69 = vmatprep.subr.mxu0 0.0
    %70 = vmatpush1.msra.mxu0 0.0
    %71 = vmatprep.subr.mxu0 0.0
    %72 = vmatpush1.msra.mxu0 0.0
    %73 = vmatprep.subr.mxu0 0.0
    %74 = vmatpush1.msra.mxu0 0.0
    %75 = vmatprep.subr.mxu0 0.0
    %76 = vmatpush1.msra.mxu0 0.0
    %77 = vmatprep.subr.mxu0 0.0
    %78 = vmatpush1.msra.mxu0 0.0
    %79 = vmatprep.subr.mxu0 0.0
    %80 = vmatpush1.msra.mxu0 0.0
    %81 = vmatprep.subr.mxu0 0.0
    %82 = vmatpush1.msra.mxu0 0.0
    %83 = vmatprep.subr.mxu0 0.0
    %84 = vmatpush1.msra.mxu0 0.0
    %85 = vmatprep.subr.mxu0 0.0
    %86 = vmatpush1.msra.mxu0 0.0
    %87 = vmatprep.subr.mxu0 0.0
    %88 = vmatpush1.msra.mxu0 0.0
    %89 = vmatprep.subr.mxu0 0.0
    %90 = vmatpush1.msra.mxu0 0.0
    %91 = vmatprep.subr.mxu0 0.0
    %92 = vmatpush1.msra.mxu0 0.0
    %93 = vmatprep.subr.mxu0 0.0
    %94 = vmatpush1.msra.mxu0 0.0
    %95 = vmatprep.subr.mxu0 0.0
    %96 = vmatpush1.msra.mxu0 %v57
    %97 = vmatprep.subr.mxu0 0.0
    %98 = vmatpush1.msra.mxu0 %v56
    %99 = vmatprep.subr.mxu0 0.0
    %100 = vmatpush2.msra.mxu0 0.0
    %101 = vmatprep.subr.mxu0 0.0
    %102 = vmatpush2.msra.mxu0 0.0
    %103 = vmatprep.subr.mxu0 0.0
    %104 = vmatpush2.msra.mxu0 0.0
    %105 = vmatprep.subr.mxu0 0.0
    %106 = vmatpush2.msra.mxu0 0.0
    %107 = vmatprep.subr.mxu0 0.0
    %108 = vmatpush2.msra.mxu0 0.0
    %109 = vmatprep.subr.mxu0 0.0
    %110 = vmatpush2.msra.mxu0 0.0
    %111 = vmatprep.subr.mxu0 0.0
    %112 = vmatpush2.msra.mxu0 0.0
    %113 = vmatprep.subr.mxu0 0.0
    %114 = vmatpush2.msra.mxu0 0.0
    %115 = vmatprep.subr.mxu0 0.0
    %116 = vmatpush2.msra.mxu0 0.0
    %117 = vmatprep.subr.mxu0 0.0
    %118 = vmatpush2.msra.mxu0 0.0
    %119 = vmatprep.subr.mxu0 0.0
    %120 = vmatpush2.msra.mxu0 0.0
    %121 = vmatprep.subr.mxu0 0.0
    %122 = vmatpush2.msra.mxu0 0.0
    %123 = vmatprep.subr.mxu0 0.0
    %124 = vmatpush2.msra.mxu0 0.0
    %125 = vmatprep.subr.mxu0 0.0
    %126 = vmatpush2.msra.mxu0 0.0
    %127 = vmatprep.subr.mxu0 0.0
    %128 = vmatpush2.msra.mxu0 0.0
    %129 = vmatprep.subr.mxu0 0.0
    %130 = vmatpush2.msra.mxu0 0.0
    %131 = vmatprep.mubr.f32.mxu0 0.0
    %132 = vmatmul.mubr.f32.gmra.mxu0 %v65
    %v133 = vpop.f32.mrf.mxu0
    %v134 = vadd.f32 %v62, %v133
    %v135 = vpop.f32.mrf.mxu0
    %136 = vdwg.mxu0
    %v137 = vtanh.pop %v134
    %v138 = vld [vmem:[%s3 + $0x1] sm:$0x1]
    %v139 = vld [vmem:[%s3 + $0x2] sm:$0x1]
    %v140 = vlaneseq
    %v141 = vshrl.u32 %v140, 7
    %v142 = vsub.s32 0, %v141
    %v143 = vrot.slane %v138, %v142
    %v144 = vmul.f32 %v54, %v143
    %v145 = vlaneseq
    %v146 = vshrl.u32 %v145, 7
    %v147 = vsub.s32 0, %v146
    %v148 = vrot.slane %v139, %v147
    %v149 = vmul.f32 %v137, %v148
    %v150 = vadd.f32 %v144, %v149
    %vm151 = vcmask 254976
    %v152 = vsel %vm151, %v150, 0.0
    %153 = vadd.xlane.f32.xlu0 %v152
    %v154 = vpop.xlane.xlu0 %153
    %v155 = vld [vmem:[%s3 + $0x3] sm:$0x1]
    %v156 = vlaneseq
    %v157 = vshrl.u32 %v156, 7
    %v158 = vsub.s32 0, %v157
    %v159 = vrot.slane %v155, %v158
    %v160 = vadd.f32 %v154, %v159
    %vm161 = vcmask 1024
    %162 = vst.msk [vmem:[%s4] sm:$0x3] %vm161, %v160
    // Predicated region
    $region30: #{tpu_custom_call.1} parent=1 // pred_check
      _
    $region31: #{tpu_custom_call.1} parent=1 // pred_check_branch
      %164 = sbr.rel (0) target = $region33
    $region32: #{tpu_custom_call.1} parent=1 // pred_region
      _
    $region33: #{tpu_custom_call.1} parent=1 // pred_fallthru
      _
    // Predicated region
    $region34: #{tpu_custom_call.1} parent=1 // pred_check
      _
    $region35: #{tpu_custom_call.1} parent=1 // pred_check_branch
      %166 = sbr.rel (0) target = $region37
    $region36: #{tpu_custom_call.1} parent=1 // pred_region
      _
    $region37: #{tpu_custom_call.1} parent=1 // pred_fallthru
      _
    %167 = vsyncpa [#allocation3], 1
    %168 = vsyncpa [#allocation5], 1

</llo_original>
